<compile_context>
chip_gen: v7x
topology: tpu7x:2x2x1
jax: 0.10.0
libtpu: 0.0.40
codegen_flags: <defaults>
</compile_context>

<pallas_src>
import functools

import jax
import jax.numpy as jnp
from jax.experimental import pallas as pl
from jax.experimental.pallas import tpu as pltpu


# ---------------------------------------------------------------------------
# Kernel
# ---------------------------------------------------------------------------
def patch_embed_kernel(x_ref, w_ref, b_ref, o_ref):
    # One (tm, Kp) tile of patch-rows against the resident (Kp, Np) weight.
    # f32 accumulation on the MXU; bias add in f32 on the VPU.
    acc = jnp.dot(x_ref[...], w_ref[...], preferred_element_type=jnp.float32)
    o_ref[...] = (acc + b_ref[...]).astype(o_ref.dtype)


# ---------------------------------------------------------------------------
# Generation-aware sizing helpers
# ---------------------------------------------------------------------------
def _round_up(x, m):
    return (x + m - 1) // m * m


def _tpu_generation():
    try:
        kind = jax.devices()[0].device_kind.lower()
    except Exception:
        return 0
    for g in (7, 6, 5, 4):
        if f"v{g}" in kind:
            return g
    return 0


def _vmem_capacity_bytes(gen):
    try:
        return int(pltpu.get_tpu_info().vmem_capacity_bytes)
    except Exception:
        if gen >= 7:
            return 64 << 20      # v7x: 64 MiB per TensorCore
        if gen in (5, 6):
            return 128 << 20     # v5e / v6e
        return 64 << 20          # unknown: be conservative


def _vmem_bytes(tm, kp, np_, in_bytes, out_bytes):
    x_tile = 2 * tm * kp * in_bytes      # double-buffered bf16 input tile
    w_res = 2 * kp * np_ * in_bytes      # resident weight (2 pipeline buffers)
    b_res = 2 * np_ * 4                  # resident f32 bias
    out_tile = 2 * tm * np_ * out_bytes  # double-buffered output tile
    acc_f32 = tm * np_ * 4               # f32 matmul + bias-add intermediate
    return x_tile + w_res + b_res + out_tile + acc_f32


def _pick_tm(M, kp, np_, in_bytes, out_bytes, *, tm_max, budget, m_align, min_steps):
    # Largest tile first: per-grid-step overhead is ~0.35 us and DMA
    # efficiency climbs steeply up to 512-1024-row tiles.
    tm = min(tm_max, _round_up(M, 16))                 # bf16 packs 16 rows/vreg
    # Keep every TensorCore busy (v7x megacore needs >= 2 grid steps).
    if min_steps > 1:
        tm = min(tm, max(16, _round_up(pl.cdiv(M, min_steps), 16)))
    # Shrink until the working set fits the VMEM budget.
    while tm > 16 and _vmem_bytes(tm, kp, np_, in_bytes, out_bytes) > budget:
        tm = max(16, _round_up(tm // 2, 16))
    # Align to the MXU M dimension when there is room; never exceed M.
    if tm >= m_align:
        tm = (tm // m_align) * m_align
    if tm > M:
        tm = max(8, _round_up(M, 8))
    return tm


# ---------------------------------------------------------------------------
# Wrapper
# ---------------------------------------------------------------------------
def patch_embed(x, weight, bias, patch_size, *, tm_max=1024, out_dtype=None):
    """x: (B, C, H, W) NCHW; weight: (D, C, p, p); bias: (D,).

    Returns (B, n_patches, D), matching nn.Conv2d(k=s=p) -> flatten(2) ->
    transpose(1, 2).  Inputs are consumed in bf16 (f32 accumulation); set
    out_dtype=jnp.bfloat16 to also halve output write traffic.
    """
    B, C, H, W = x.shape
    D = weight.shape[0]
    p = patch_size
    hp, wp = H // p, W // p
    n_patches = hp * wp

    out_dtype = x.dtype if out_dtype is None else out_dtype
    out_bytes = jnp.dtype(out_dtype).itemsize

    gen = _tpu_generation()
    k_align = 256 if gen >= 6 else 128       # MXU contraction depth
    m_align = 256 if gen >= 6 else 128       # MXU M dimension
    min_steps = 2 if gen >= 7 else 1         # keep both v7x TensorCores busy

    vmem_cap = _vmem_capacity_bytes(gen)
    vmem_limit = max(32 << 20, min(vmem_cap - (16 << 20), (vmem_cap * 3) // 4))
    budget = max(vmem_limit - (8 << 20), vmem_limit // 2)

    # ---- glue: bf16 cast first, then extract non-overlapping patches
    # row-major over (hp, wp).  With allow_input_fusion this shuffle (and any
    # K pad) fuses into the pallas input DMA -> no separate HBM round trip.
    xb = x.astype(jnp.bfloat16)
    xp = xb.reshape(B, C, hp, p, wp, p)
    xp = xp.transpose(0, 2, 4, 1, 3, 5)
    xp = xp.reshape(B * n_patches, C * p * p)

    # Conv2d(kernel=stride=p) == matmul with the flattened (C, p, p) weight.
    w2d = weight.astype(jnp.bfloat16).reshape(D, C * p * p).T   # (K, N) bf16
    b2d = bias.astype(jnp.float32).reshape(1, D)                # (1, N) f32

    M, K = xp.shape
    N = D

    # Pad K to the MXU depth only when it is large enough to matter (a
    # full-extent block is legal for any K, so small K needs no copy).
    Kp = _round_up(K, k_align) if K >= 128 else K
    # Pad N to a lane-dense multiple of 128 (unmasked vector stores); typical
    # ViT embed dims are already aligned so this is usually a no-op.
    Np = _round_up(N, 128)

    if Kp != K:
        xp = jnp.pad(xp, ((0, 0), (0, Kp - K)))
    if Kp != K or Np != N:
        w2d = jnp.pad(w2d, ((0, Kp - K), (0, Np - N)))
    if Np != N:
        b2d = jnp.pad(b2d, ((0, 0), (0, Np - N)))

    tm = _pick_tm(M, Kp, Np, in_bytes=2, out_bytes=out_bytes,
                  tm_max=tm_max, budget=budget, m_align=m_align,
                  min_steps=min_steps)
    grid_m = pl.cdiv(M, tm)   # ragged last M tile handled by Pallas masking

    out = pl.pallas_call(
        patch_embed_kernel,
        out_shape=jax.ShapeDtypeStruct((M, Np), out_dtype),
        grid=(grid_m,),
        in_specs=[
            pl.BlockSpec((tm, Kp), lambda i: (i, 0)),
            pl.BlockSpec((Kp, Np), lambda i: (0, 0)),   # resident weight
            pl.BlockSpec((1, Np), lambda i: (0, 0)),    # resident bias
        ],
        out_specs=pl.BlockSpec((tm, Np), lambda i: (i, 0)),
        compiler_params=pltpu.CompilerParams(
            dimension_semantics=("parallel",),
            vmem_limit_bytes=int(vmem_limit),
            # Let XLA fuse the bf16 cast + patch shuffle (+ pad) into the
            # activation's input DMA so x is read from HBM exactly once.
            allow_input_fusion=[True, False, False],
        ),
    )(xp, w2d, b2d)

    if Np != N:
        out = out[:, :N]
    return out.reshape(B, n_patches, D)


def reference_patch_embed(x, weight, bias, patch_size):
    """Pure-JAX f32 reference: nn.Conv2d(stride=kernel=p) + flatten + transpose."""
    y = jax.lax.conv_general_dilated(
        x, weight,
        window_strides=(patch_size, patch_size),
        padding="VALID",
        dimension_numbers=("NCHW", "OIHW", "NCHW"),
    ) + bias.reshape(1, -1, 1, 1)
    B, D, hp, wp = y.shape
    return y.reshape(B, D, hp * wp).transpose(0, 2, 1)


if __name__ == "__main__":
    # Small config consistent with the module: img=16, patch=4, C=4, D=32, B=2
    img_size, patch_size, in_channels, embed_dim, batch = 16, 4, 4, 32, 2

    key = jax.random.PRNGKey(0)
    kx, kw, kb = jax.random.split(key, 3)
    x = jax.random.normal(kx, (batch, in_channels, img_size, img_size), jnp.float32)
    weight = jax.random.normal(
        kw, (embed_dim, in_channels, patch_size, patch_size), jnp.float32) * 0.02
    bias = jax.random.normal(kb, (embed_dim,), jnp.float32) * 0.02

    # jit so the cast/shuffle producer can actually fuse into the input DMA.
    fwd = jax.jit(functools.partial(patch_embed, patch_size=patch_size))
    out = jax.block_until_ready(fwd(x, weight, bias))

    ref = reference_patch_embed(x, weight, bias, patch_size)
    assert out.shape == (batch, (img_size // patch_size) ** 2, embed_dim), out.shape
    # bf16 inputs with f32 accumulation -> loosened tolerance vs. f32 conv ref.
    assert jnp.allclose(out, ref, atol=2e-2, rtol=2e-2), float(jnp.max(jnp.abs(out - ref)))

    print("KERNEL_OK")
</pallas_src>

<mosaic_0001>
module attributes {stable_mosaic.version = 11 : i64} {
  func.func @patch_embed_kernel(%arg0: i32, %arg1: memref<32x64xbf16, #tpu.memory_space<vmem>>, %arg2: memref<64x128xbf16, #tpu.memory_space<vmem>>, %arg3: memref<1x128xf32, #tpu.memory_space<vmem>>, %arg4: memref<32x128xf32, #tpu.memory_space<vmem>>) attributes {dimension_semantics = [#tpu.dimension_semantics<parallel>], iteration_bounds = array<i64: 1>, scalar_prefetch = 0 : i64, scratch_operands = 0 : i64, tpu.core_type = #tpu.core_type<tc>, window_params = [{transform_indices = @transform_0, window_bounds = array<i64: 32, 64>}, {pipeline_mode = #tpu.pipeline_mode<synchronous>, transform_indices = @transform_1, window_bounds = array<i64: 64, 128>}, {pipeline_mode = #tpu.pipeline_mode<synchronous>, transform_indices = @transform_2, window_bounds = array<i64: 1, 128>}, {transform_indices = @transform_3, window_bounds = array<i64: 32, 128>}]} {
    %c0 = arith.constant 0 : index
    %c0_0 = arith.constant 0 : index
    %0 = vector.load %arg1[%c0, %c0_0] : memref<32x64xbf16, #tpu.memory_space<vmem>>, vector<32x64xbf16>
    %c0_1 = arith.constant 0 : index
    %c0_2 = arith.constant 0 : index
    %1 = vector.load %arg2[%c0_1, %c0_2] : memref<64x128xbf16, #tpu.memory_space<vmem>>, vector<64x128xbf16>
    %cst = arith.constant dense<0.000000e+00> : vector<32x128xf32>
    %2 = tpu.matmul %0, %1, %cst {dimension_numbers = #tpu.dot_dimension_numbers<[1], [0], [0], [1], [0, 0, 1, 1], [], []>} : vector<32x64xbf16>, vector<64x128xbf16>, vector<32x128xf32> -> vector<32x128xf32>
    %c0_3 = arith.constant 0 : index
    %c0_4 = arith.constant 0 : index
    %3 = vector.load %arg3[%c0_3, %c0_4] : memref<1x128xf32, #tpu.memory_space<vmem>>, vector<1x128xf32>
    %4 = vector.broadcast %3 : vector<1x128xf32> to vector<32x128xf32>
    %5 = arith.addf %2, %4 : vector<32x128xf32>
    %c0_5 = arith.constant 0 : index
    %c0_6 = arith.constant 0 : index
    %6 = vector.load %arg4[%c0_5, %c0_6] : memref<32x128xf32, #tpu.memory_space<vmem>>, vector<32x128xf32>
    tpu.vector_store %arg4[%c0_5, %c0_6], %5 {strides = array<i32>} : memref<32x128xf32, #tpu.memory_space<vmem>>, vector<32x128xf32>,
    return
  }
  func.func @transform_0(%arg0: i32) -> (i32, i32) {
    %c0_i32 = arith.constant 0 : i32
    %c0_i32_0 = arith.constant 0 : i32
    return %arg0, %c0_i32 : i32, i32
  }
  func.func @transform_1(%arg0: i32) -> (i32, i32) {
    %c0_i32 = arith.constant 0 : i32
    %c0_i32_0 = arith.constant 0 : i32
    %c0_i32_1 = arith.constant 0 : i32
    return %c0_i32, %c0_i32_0 : i32, i32
  }
  func.func @transform_2(%arg0: i32) -> (i32, i32) {
    %c0_i32 = arith.constant 0 : i32
    %c0_i32_0 = arith.constant 0 : i32
    %c0_i32_1 = arith.constant 0 : i32
    return %c0_i32, %c0_i32_0 : i32, i32
  }
  func.func @transform_3(%arg0: i32) -> (i32, i32) {
    %c0_i32 = arith.constant 0 : i32
    %c0_i32_0 = arith.constant 0 : i32
    return %arg0, %c0_i32 : i32, i32
  }
}

</mosaic_0001>

<llo_original>
// kernel: patch_embed.1
$region0: #{patch_embed.1}
  #allocation0 [shape = 'u32[]', space=smem, size = 0x4, offset = 0x4, fixed_abs, tag = 'smem constant byte address 0x4 - core index']
  #allocation1 [shape = 'u32[144,128]{1,0:T(1,128)}', space=vmem, size = 0x12000, scoped, tag = 'internal scratch']
  %s0 = inlined_call_operand.vmem [shape: bf16[32,64], index: 0, kind: input, shape index: {}]
  %s1 = inlined_call_operand.vmem [shape: bf16[64,128], index: 1, kind: input, shape index: {}]
  %s2 = inlined_call_operand.vmem [shape: f32[1,128], index: 2, kind: input, shape index: {}]
  %s3 = inlined_call_operand.hbm [shape: f32[32,128], index: 3, kind: output, shape index: {}]
  %s4 = sld [smem:[#allocation0]]
  $region22: #{patch_embed.1} parent=0
    _
  %s6 = ssub.s32 1, %s4
  %s7 = scalar_select 0, %s6, %s4
  $region1: #{patch_embed.1} parent=0
    #allocation2 [shape = 'u8[16384]{0}', space=vmem, size = 0x4000, scoped, tag = 'output window, operand 0, single buffered']
    #allocation3 [shape = 's32[1]{0}', space=sflag, size = 0x4, scoped, tag = 'scoped memory for patch_embed.1']
    %8 = vsyncpa [#allocation3], 0
    // Predicated region
    $region2: #{patch_embed.1} parent=1 // pred_check
      _
    $region3: #{patch_embed.1} parent=1 // pred_check_branch
      %10 = sbr.rel (0) target = $region5
    $region4: #{patch_embed.1} parent=1 // pred_region
      _
    $region5: #{patch_embed.1} parent=1 // pred_fallthru
      _
    // Predicated region
    $region6: #{patch_embed.1} parent=1 // pred_check
      _
    $region7: #{patch_embed.1} parent=1 // pred_check_branch
      %12 = sbr.rel (0) target = $region9
    $region8: #{patch_embed.1} parent=1 // pred_region
      _
    $region9: #{patch_embed.1} parent=1 // pred_fallthru
      _
    // Predicated region
    $region10: #{patch_embed.1} parent=1 // pred_check
      _
    $region11: #{patch_embed.1} parent=1 // pred_check_branch
      %14 = sbr.rel (0) target = $region13
    $region12: #{patch_embed.1} parent=1 // pred_region
      _
    $region13: #{patch_embed.1} parent=1 // pred_fallthru
      _
    %v16 = vld [vmem:[%s0] sm:$0xf]
    %v17 = vld [vmem:[%s0 + $0x4] sm:$0xf]
    %v18 = vld [vmem:[%s0 + $0x8] sm:$0xf]
    %v19 = vld [vmem:[%s0 + $0xc] sm:$0xf]
    %v20 = vld [vmem:[%s1] sm:$0xf]
    %v21 = vld [vmem:[%s1 + $0x4] sm:$0xf]
    %v22 = vld [vmem:[%s1 + $0x8] sm:$0xf]
    %v23 = vld [vmem:[%s1 + $0xc] sm:$0xf]
    %v24 = vld [vmem:[%s1 + $0x10] sm:$0xf]
    %v25 = vld [vmem:[%s1 + $0x14] sm:$0xf]
    %v26 = vld [vmem:[%s1 + $0x18] sm:$0xf]
    %v27 = vld [vmem:[%s1 + $0x1c] sm:$0xf]
    %v28 = vld [vmem:[%s2] sm:$0x1]
    %v30 = vlaneseq
    %v31 = vshrl.u32 %v30, 7
    %v32 = vsub.s32 0, %v31
    %v33 = vrot.slane %v28, %v32
    %v39 = vunpack.c.l.b16 %v16
    %v40 = vunpack.c.l.b16 %v17
    %v41 = vunpack.c.l.b16 %v18
    %v42 = vunpack.c.l.b16 %v19
    %v43 = vpack.c.b16 %v40, %v39
    %v44 = vpack.c.b16 %v42, %v41
    %v53 = vunpack.c.l.b16 %v20
    %v54 = vunpack.c.l.b16 %v21
    %v55 = vunpack.c.l.b16 %v22
    %v56 = vunpack.c.l.b16 %v23
    %v57 = vunpack.c.l.b16 %v24
    %v58 = vunpack.c.l.b16 %v25
    %v59 = vunpack.c.l.b16 %v26
    %v60 = vunpack.c.l.b16 %v27
    %v61 = vpack.c.b16 %v54, %v53
    %v62 = vpack.c.b16 %v56, %v55
    %v63 = vpack.c.b16 %v58, %v57
    %v64 = vpack.c.b16 %v60, %v59
    %vm69 = vcmask 523264
    %v71 = vsel %vm69, %v43, 0
    %v74 = vsel %vm69, %v44, 0
    %76 = vmatprep.subr.bf16.mxu0 0
    %77 = vmatpush1.bf16.msra.mxu0 %v61
    %78 = vmatprep.subr.bf16.mxu0 0
    %79 = vmatpush1.bf16.msra.mxu0 %v62
    %80 = vmatprep.subr.bf16.mxu0 0
    %81 = vmatpush1.bf16.msra.mxu0 %v63
    %82 = vmatprep.subr.bf16.mxu0 0
    %83 = vmatpush1.bf16.msra.mxu0 %v64
    %84 = vmatprep.subr.bf16.mxu0 0
    %85 = vmatpush1.bf16.msra.mxu0 0
    %86 = vmatprep.subr.bf16.mxu0 0
    %87 = vmatpush1.bf16.msra.mxu0 0
    %88 = vmatprep.subr.bf16.mxu0 0
    %89 = vmatpush1.bf16.msra.mxu0 0
    %90 = vmatprep.subr.bf16.mxu0 0
    %91 = vmatpush1.bf16.msra.mxu0 0
    %92 = vmatprep.subr.bf16.mxu0 0
    %93 = vmatpush1.bf16.msra.mxu0 0
    %94 = vmatprep.subr.bf16.mxu0 0
    %95 = vmatpush1.bf16.msra.mxu0 0
    %96 = vmatprep.subr.bf16.mxu0 0
    %97 = vmatpush1.bf16.msra.mxu0 0
    %98 = vmatprep.subr.bf16.mxu0 0
    %99 = vmatpush1.bf16.msra.mxu0 0
    %100 = vmatprep.subr.bf16.mxu0 0
    %101 = vmatpush1.bf16.msra.mxu0 0
    %102 = vmatprep.subr.bf16.mxu0 0
    %103 = vmatpush1.bf16.msra.mxu0 0
    %104 = vmatprep.subr.bf16.mxu0 0
    %105 = vmatpush1.bf16.msra.mxu0 0
    %106 = vmatprep.subr.bf16.mxu0 0
    %107 = vmatpush1.bf16.msra.mxu0 0
    %108 = vmatprep.mubr.bf16.mxu0 0
    %109 = vmatmul.mubr.bf16.gmra.mrb[0].mxu0 %v71
    %v110 = vpop.f32.mrb[0].mxu0
    %v111 = vadd.f32 %v33, %v110
    %v112 = vpop.f32.mrb[0].mxu0
    %v113 = vpop.f32.mrb[0].mxu0
    %v114 = vadd.f32 %v33, %v113
    %v115 = vpop.f32.mrb[0].mxu0
    %116 = vmatprep.mubr.bf16.mxu0 0
    %117 = vmatmul.mubr.bf16.gmra.mrb[0].mxu0 %v74
    %v118 = vpop.f32.mrb[0].mxu0
    %v119 = vadd.f32 %v33, %v118
    %v120 = vpop.f32.mrb[0].mxu0
    %v121 = vpop.f32.mrb[0].mxu0
    %v122 = vadd.f32 %v33, %v121
    %v123 = vpop.f32.mrb[0].mxu0
    %124 = vdwg.mxu0
    %125 = vst [vmem:[#allocation2] sm:$0xff] %v111
    %126 = vst [vmem:[#allocation2 + $0x8] sm:$0xff] %v114
    %127 = vst [vmem:[#allocation2 + $0x10] sm:$0xff] %v119
    %128 = vst [vmem:[#allocation2 + $0x18] sm:$0xff] %v122
    // Predicated region
    $region14: #{patch_embed.1} parent=1 // pred_check
      _
    $region15: #{patch_embed.1} parent=1 // pred_check_branch
      %130 = sbr.rel (0) target = $region17
    $region16: #{patch_embed.1} parent=1 // pred_region
      %s132 = ssub.s32 512, 512
      %133 = vsyncadd [#allocation3], %s132
      %s134 = sshll.u32 [#allocation2], 4
      %s135 = int_to_ptr.vmem [resolvable:$true] %s134
      %140 = dma.vmem_to_hbm [thread:$0]  %s135, 512, %s3, [#allocation3], 128, 128, 8
    $region17: #{patch_embed.1} parent=1 // pred_fallthru
      _
    // Predicated region
    $region18: #{patch_embed.1} parent=1 // pred_check
      _
    $region19: #{patch_embed.1} parent=1 // pred_check_branch
      %142 = sbr.rel (0) target = $region21
    $region20: #{patch_embed.1} parent=1 // pred_region
      %143 = dma.done [#allocation3], 512
    $region21: #{patch_embed.1} parent=1 // pred_fallthru
      _
    %144 = vsyncpa [#allocation3], 1

</llo_original>
